<compile_context>
chip_gen: v5e
topology: v5e:2x2
jax: 0.10.0
libtpu: 0.0.40
codegen_flags: <defaults>
</compile_context>

<pallas_src>
import math

import jax
import jax.numpy as jnp
from jax.experimental import pallas as pl
from jax.experimental.pallas import tpu as pltpu


def _round_up(n, m):
    return ((n + m - 1) // m) * m


def rnd_mlp_kernel(x_ref, w1_ref, b1_ref, w2_ref, b2_ref, w3_ref, b3_ref, o_ref):
    # Fused 3-layer MLP on one (TM, Din) batch tile. Weights arrive as bf16 and stay
    # resident in VMEM; accumulation, bias-add and ReLU run in f32, intermediate
    # activations are re-cast to bf16 before feeding the next MXU pass.
    x = x_ref[...].astype(jnp.bfloat16)

    h1 = jnp.dot(x, w1_ref[...], preferred_element_type=jnp.float32) + b1_ref[...]
    h1 = jnp.maximum(h1, 0.0).astype(jnp.bfloat16)

    h2 = jnp.dot(h1, w2_ref[...], preferred_element_type=jnp.float32) + b2_ref[...]
    h2 = jnp.maximum(h2, 0.0).astype(jnp.bfloat16)

    out = jnp.dot(h2, w3_ref[...], preferred_element_type=jnp.float32) + b3_ref[...]
    o_ref[...] = out.astype(o_ref.dtype)


def rnd_network_forward(x, params, *, block_rows=512):
    """x: [B, input_dim] float32. params: dict of w1,b1,w2,b2,w3,b3 (f32, [D_in, D_out])."""
    B, Din = x.shape
    H1 = params["w1"].shape[1]          # 128
    H2 = params["w2"].shape[1]          # 128
    Dout = params["w3"].shape[1]        # 64
    LANE = 128
    Dout_p = _round_up(Dout, LANE)      # pad last layer to a lane-dense 128-wide output

    # Batch tile: multiple of 8 sublanes, capped by the (padded) batch size.
    # Default 512 rows keeps per-step VMEM tiny (< 1 MiB double-buffered) even on v7x.
    TM = min(block_rows, _round_up(B, 8))
    Bp = _round_up(B, TM)
    xp = x if Bp == B else jnp.pad(x, ((0, Bp - B), (0, 0)))

    # bf16 weights (full-rate MXU, half the weight DMA); f32 biases added post-accumulate.
    w1 = params["w1"].astype(jnp.bfloat16)
    w2 = params["w2"].astype(jnp.bfloat16)
    w3 = jnp.pad(params["w3"], ((0, 0), (0, Dout_p - Dout))).astype(jnp.bfloat16)
    b1 = params["b1"].reshape(1, H1).astype(jnp.float32)
    b2 = params["b2"].reshape(1, H2).astype(jnp.float32)
    b3 = jnp.pad(params["b3"], (0, Dout_p - Dout)).reshape(1, Dout_p).astype(jnp.float32)

    grid = (Bp // TM,)
    resident = lambda shape: pl.BlockSpec(shape, lambda i: (0, 0))  # stays in VMEM

    flops = 2 * Bp * (Din * H1 + H1 * H2 + H2 * Dout_p)
    bytes_accessed = (xp.size * 4 + Bp * Dout_p * 4
                      + (w1.size + w2.size + w3.size) * 2
                      + (b1.size + b2.size + b3.size) * 4)

    out = pl.pallas_call(
        rnd_mlp_kernel,
        out_shape=jax.ShapeDtypeStruct((Bp, Dout_p), jnp.float32),
        grid=grid,
        in_specs=[
            pl.BlockSpec((TM, Din), lambda i: (i, 0)),   # batch-tiled input (pipelined)
            resident((Din, H1)), resident((1, H1)),
            resident((H1, H2)), resident((1, H2)),
            resident((H2, Dout_p)), resident((1, Dout_p)),
        ],
        out_specs=pl.BlockSpec((TM, Dout_p), lambda i: (i, 0)),
        compiler_params=pltpu.CompilerParams(
            dimension_semantics=("parallel",)),          # shard batch across TCs (v7x)
        cost_estimate=pl.CostEstimate(
            flops=flops, transcendentals=0, bytes_accessed=bytes_accessed),
    )(xp, w1, b1, w2, b2, w3, b3)

    return out[:B, :Dout]


def init_rnd_params(key, input_dim):
    """nn.Linear-default init: U(-1/sqrt(fan_in), 1/sqrt(fan_in)) for
       Linear(input_dim,128), Linear(128,128), Linear(128,64)."""
    dims = [(input_dim, 128), (128, 128), (128, 64)]
    params = {}
    for i, (fan_in, fan_out) in enumerate(dims, start=1):
        key, kw, kb = jax.random.split(key, 3)
        bound = 1.0 / math.sqrt(fan_in)
        params[f"w{i}"] = jax.random.uniform(
            kw, (fan_in, fan_out), jnp.float32, -bound, bound)
        params[f"b{i}"] = jax.random.uniform(
            kb, (fan_out,), jnp.float32, -bound, bound)
    return params


def reference_forward_f32(x, params):
    h = jnp.maximum(x @ params["w1"] + params["b1"], 0.0)
    h = jnp.maximum(h @ params["w2"] + params["b2"], 0.0)
    return h @ params["w3"] + params["b3"]


def reference_forward_bf16(x, params):
    # Mirrors the kernel's numerics (bf16 matmul operands, f32 accumulate/bias/ReLU).
    bf = jnp.bfloat16
    h = jnp.dot(x.astype(bf), params["w1"].astype(bf),
                preferred_element_type=jnp.float32) + params["b1"]
    h = jnp.maximum(h, 0.0).astype(bf)
    h = jnp.dot(h, params["w2"].astype(bf),
                preferred_element_type=jnp.float32) + params["b2"]
    h = jnp.maximum(h, 0.0).astype(bf)
    return jnp.dot(h, params["w3"].astype(bf),
                   preferred_element_type=jnp.float32) + params["b3"]


if __name__ == "__main__":
    key = jax.random.PRNGKey(0)
    key, kx = jax.random.split(key)

    # Batch chosen non-divisible by the tile to exercise padding + a 4-step grid.
    batch, input_dim = 200, 32
    x = jax.random.normal(kx, (batch, input_dim), jnp.float32)
    params = init_rnd_params(key, input_dim)

    out = rnd_network_forward(x, params, block_rows=64)
    out = jax.block_until_ready(out)
    assert out.shape == (batch, 64), out.shape

    # Tight check vs. a reference with identical bf16/f32 mixed-precision math.
    ref_bf16 = reference_forward_bf16(x, params)
    assert jnp.allclose(out, ref_bf16, atol=1e-3, rtol=1e-3), "mismatch vs bf16 reference"

    # Loose sanity check vs. the pure fp32 PyTorch-equivalent forward.
    ref_f32 = reference_forward_f32(x, params)
    assert jnp.allclose(out, ref_f32, atol=2e-1, rtol=2e-1), "mismatch vs f32 reference"

    print("KERNEL_OK")
</pallas_src>

<mosaic_0001>
module attributes {stable_mosaic.version = 11 : i64} {
  func.func @rnd_mlp_kernel(%arg0: i32, %arg1: memref<64x32xf32, #tpu.memory_space<vmem>>, %arg2: memref<32x128xbf16, #tpu.memory_space<vmem>>, %arg3: memref<1x128xf32, #tpu.memory_space<vmem>>, %arg4: memref<128x128xbf16, #tpu.memory_space<vmem>>, %arg5: memref<1x128xf32, #tpu.memory_space<vmem>>, %arg6: memref<128x128xbf16, #tpu.memory_space<vmem>>, %arg7: memref<1x128xf32, #tpu.memory_space<vmem>>, %arg8: memref<64x128xf32, #tpu.memory_space<vmem>>) attributes {dimension_semantics = [#tpu.dimension_semantics<parallel>], iteration_bounds = array<i64: 4>, scalar_prefetch = 0 : i64, scratch_operands = 0 : i64, tpu.core_type = #tpu.core_type<tc>, window_params = [{transform_indices = @transform_0, window_bounds = array<i64: 64, 32>}, {pipeline_mode = #tpu.pipeline_mode<synchronous>, transform_indices = @transform_1, window_bounds = array<i64: 32, 128>}, {pipeline_mode = #tpu.pipeline_mode<synchronous>, transform_indices = @transform_2, window_bounds = array<i64: 1, 128>}, {pipeline_mode = #tpu.pipeline_mode<synchronous>, transform_indices = @transform_3, window_bounds = array<i64: 128, 128>}, {pipeline_mode = #tpu.pipeline_mode<synchronous>, transform_indices = @transform_4, window_bounds = array<i64: 1, 128>}, {pipeline_mode = #tpu.pipeline_mode<synchronous>, transform_indices = @transform_5, window_bounds = array<i64: 128, 128>}, {pipeline_mode = #tpu.pipeline_mode<synchronous>, transform_indices = @transform_6, window_bounds = array<i64: 1, 128>}, {transform_indices = @transform_7, window_bounds = array<i64: 64, 128>}]} {
    %c0 = arith.constant 0 : index
    %c0_0 = arith.constant 0 : index
    %0 = vector.load %arg1[%c0, %c0_0] : memref<64x32xf32, #tpu.memory_space<vmem>>, vector<64x32xf32>
    %1 = arith.truncf %0 : vector<64x32xf32> to vector<64x32xbf16>
    %c0_1 = arith.constant 0 : index
    %c0_2 = arith.constant 0 : index
    %2 = vector.load %arg2[%c0_1, %c0_2] : memref<32x128xbf16, #tpu.memory_space<vmem>>, vector<32x128xbf16>
    %cst = arith.constant dense<0.000000e+00> : vector<64x128xf32>
    %3 = tpu.matmul %1, %2, %cst {dimension_numbers = #tpu.dot_dimension_numbers<[1], [0], [0], [1], [0, 0, 1, 1], [], []>} : vector<64x32xbf16>, vector<32x128xbf16>, vector<64x128xf32> -> vector<64x128xf32>
    %c0_3 = arith.constant 0 : index
    %c0_4 = arith.constant 0 : index
    %4 = vector.load %arg3[%c0_3, %c0_4] : memref<1x128xf32, #tpu.memory_space<vmem>>, vector<1x128xf32>
    %5 = vector.broadcast %4 : vector<1x128xf32> to vector<64x128xf32>
    %6 = arith.addf %3, %5 : vector<64x128xf32>
    %cst_5 = arith.constant 0.000000e+00 : f32
    %7 = vector.broadcast %cst_5 : f32 to vector<64x128xf32>
    %8 = arith.maximumf %6, %7 : vector<64x128xf32>
    %9 = arith.truncf %8 : vector<64x128xf32> to vector<64x128xbf16>
    %c0_6 = arith.constant 0 : index
    %c0_7 = arith.constant 0 : index
    %10 = vector.load %arg4[%c0_6, %c0_7] : memref<128x128xbf16, #tpu.memory_space<vmem>>, vector<128x128xbf16>
    %cst_8 = arith.constant dense<0.000000e+00> : vector<64x128xf32>
    %11 = tpu.matmul %9, %10, %cst_8 {dimension_numbers = #tpu.dot_dimension_numbers<[1], [0], [0], [1], [0, 0, 1, 1], [], []>} : vector<64x128xbf16>, vector<128x128xbf16>, vector<64x128xf32> -> vector<64x128xf32>
    %c0_9 = arith.constant 0 : index
    %c0_10 = arith.constant 0 : index
    %12 = vector.load %arg5[%c0_9, %c0_10] : memref<1x128xf32, #tpu.memory_space<vmem>>, vector<1x128xf32>
    %13 = vector.broadcast %12 : vector<1x128xf32> to vector<64x128xf32>
    %14 = arith.addf %11, %13 : vector<64x128xf32>
    %cst_11 = arith.constant 0.000000e+00 : f32
    %15 = vector.broadcast %cst_11 : f32 to vector<64x128xf32>
    %16 = arith.maximumf %14, %15 : vector<64x128xf32>
    %17 = arith.truncf %16 : vector<64x128xf32> to vector<64x128xbf16>
    %c0_12 = arith.constant 0 : index
    %c0_13 = arith.constant 0 : index
    %18 = vector.load %arg6[%c0_12, %c0_13] : memref<128x128xbf16, #tpu.memory_space<vmem>>, vector<128x128xbf16>
    %cst_14 = arith.constant dense<0.000000e+00> : vector<64x128xf32>
    %19 = tpu.matmul %17, %18, %cst_14 {dimension_numbers = #tpu.dot_dimension_numbers<[1], [0], [0], [1], [0, 0, 1, 1], [], []>} : vector<64x128xbf16>, vector<128x128xbf16>, vector<64x128xf32> -> vector<64x128xf32>
    %c0_15 = arith.constant 0 : index
    %c0_16 = arith.constant 0 : index
    %20 = vector.load %arg7[%c0_15, %c0_16] : memref<1x128xf32, #tpu.memory_space<vmem>>, vector<1x128xf32>
    %21 = vector.broadcast %20 : vector<1x128xf32> to vector<64x128xf32>
    %22 = arith.addf %19, %21 : vector<64x128xf32>
    %c0_17 = arith.constant 0 : index
    %c0_18 = arith.constant 0 : index
    %23 = vector.load %arg8[%c0_17, %c0_18] : memref<64x128xf32, #tpu.memory_space<vmem>>, vector<64x128xf32>
    tpu.vector_store %arg8[%c0_17, %c0_18], %22 {strides = array<i32>} : memref<64x128xf32, #tpu.memory_space<vmem>>, vector<64x128xf32>,
    return
  }
  func.func @transform_0(%arg0: i32) -> (i32, i32) {
    %c0_i32 = arith.constant 0 : i32
    %c0_i32_0 = arith.constant 0 : i32
    return %arg0, %c0_i32 : i32, i32
  }
  func.func @transform_1(%arg0: i32) -> (i32, i32) {
    %c0_i32 = arith.constant 0 : i32
    %c0_i32_0 = arith.constant 0 : i32
    %c0_i32_1 = arith.constant 0 : i32
    return %c0_i32, %c0_i32_0 : i32, i32
  }
  func.func @transform_2(%arg0: i32) -> (i32, i32) {
    %c0_i32 = arith.constant 0 : i32
    %c0_i32_0 = arith.constant 0 : i32
    %c0_i32_1 = arith.constant 0 : i32
    return %c0_i32, %c0_i32_0 : i32, i32
  }
  func.func @transform_3(%arg0: i32) -> (i32, i32) {
    %c0_i32 = arith.constant 0 : i32
    %c0_i32_0 = arith.constant 0 : i32
    %c0_i32_1 = arith.constant 0 : i32
    return %c0_i32, %c0_i32_0 : i32, i32
  }
  func.func @transform_4(%arg0: i32) -> (i32, i32) {
    %c0_i32 = arith.constant 0 : i32
    %c0_i32_0 = arith.constant 0 : i32
    %c0_i32_1 = arith.constant 0 : i32
    return %c0_i32, %c0_i32_0 : i32, i32
  }
  func.func @transform_5(%arg0: i32) -> (i32, i32) {
    %c0_i32 = arith.constant 0 : i32
    %c0_i32_0 = arith.constant 0 : i32
    %c0_i32_1 = arith.constant 0 : i32
    return %c0_i32, %c0_i32_0 : i32, i32
  }
  func.func @transform_6(%arg0: i32) -> (i32, i32) {
    %c0_i32 = arith.constant 0 : i32
    %c0_i32_0 = arith.constant 0 : i32
    %c0_i32_1 = arith.constant 0 : i32
    return %c0_i32, %c0_i32_0 : i32, i32
  }
  func.func @transform_7(%arg0: i32) -> (i32, i32) {
    %c0_i32 = arith.constant 0 : i32
    %c0_i32_0 = arith.constant 0 : i32
    return %arg0, %c0_i32 : i32, i32
  }
}

</mosaic_0001>

<llo_original>
// kernel: tpu_custom_call.1
$region0: #{tpu_custom_call.1}
  #allocation0 [shape = 'u32[]', space=smem, size = 0x4, offset = 0x4, fixed_abs, tag = 'smem constant byte address 0x4 - core index']
  #allocation1 [shape = 'u32[72,128]{1,0:T(1,128)}', space=vmem, size = 0x9000, scoped, tag = 'internal scratch']
  %s0 = inlined_call_operand.vmem [shape: f32[256,32], index: 0, kind: input, shape index: {}]
  %s1 = inlined_call_operand.vmem [shape: bf16[32,128], index: 1, kind: input, shape index: {}]
  %s2 = inlined_call_operand.vmem [shape: f32[1,128], index: 2, kind: input, shape index: {}]
  %s3 = inlined_call_operand.vmem [shape: bf16[128,128], index: 3, kind: input, shape index: {}]
  %s4 = inlined_call_operand.vmem [shape: f32[1,128], index: 4, kind: input, shape index: {}]
  %s5 = inlined_call_operand.vmem [shape: bf16[128,128], index: 5, kind: input, shape index: {}]
  %s6 = inlined_call_operand.vmem [shape: f32[1,128], index: 6, kind: input, shape index: {}]
  %s7 = inlined_call_operand.hbm [shape: f32[256,128], index: 7, kind: output, shape index: {}]
  %s8 = sld [smem:[#allocation0]]
  $region61: #{tpu_custom_call.1} parent=0
    _
  %s10 = ssub.s32 1, %s8
  %s11 = scalar_select 0, %s10, %s8
  $region1: #{tpu_custom_call.1} parent=0
    #allocation2 [shape = 'u8[65536]{0}', space=vmem, size = 0x10000, scoped, tag = 'output window, operand 0']
    #allocation3 [shape = 's32[2]{0}', space=sflag, size = 0x8, scoped, tag = 'scoped memory for tpu_custom_call.1']
    %12 = vsyncpa [#allocation3], 0
    %s13 = scalar_lea.sflag [#allocation3], 1
    %14 = vsyncpa %s13, 0
    loop: start=0, step=1, limit=6
    $region2: #{tpu_custom_call.1} parent=1 // loop_pre_header
      _
    $region3: #{tpu_custom_call.1} parent=1 // loop_header
      %s16 = sphi 0, %s20
      %p17 = scmp.ge.s32.totalorder %s16, 6
      %s26 = sphi 0, %s28
      %s29 = sphi 0, %s26
      %s30 = sphi 0, %s29
      %s46 = sphi 0, %s30
      %s50 = sphi 0, %s50
      %s52 = sphi 0, %s50
      %s53 = sphi 0, %s52
      %s67 = sphi 0, %s53
      %s71 = sphi 0, %s71
      %s73 = sphi 0, %s71
      %s74 = sphi 0, %s73
      %s88 = sphi 0, %s74
      %s92 = sphi 0, %s92
      %s94 = sphi 0, %s92
      %s95 = sphi 0, %s94
      %s109 = sphi 0, %s95
      %s113 = sphi 0, %s113
      %s115 = sphi 0, %s113
      %s116 = sphi 0, %s115
      %s130 = sphi 0, %s116
      %s134 = sphi 0, %s134
      %s136 = sphi 0, %s134
      %s137 = sphi 0, %s136
      %s151 = sphi 0, %s137
      %s155 = sphi 0, %s155
      %s157 = sphi 0, %s155
      %s158 = sphi 0, %s157
      %s172 = sphi 0, %s158
      %s178 = sphi 0, %s180
      %s181 = sphi 0, %s178
      %s182 = sphi 0, %s181
      %s198 = sphi 0, %s182
    $region4: #{tpu_custom_call.1} parent=1 // loop_header_branch
      %19 = sbr.rel (%p17) target = $region8
    $region5: #{tpu_custom_call.1} parent=1 // loop_body
      %s21 = ssub.s32 %s16, 1
      %s22 = ssub.s32 %s16, 2
      %s23 = sadd.s32 %s16, 1
      %s24 = ssub.s32 %s16, %s23
      %p25 = scmp.eq.s32.totalorder %s24, 0
      %s27 = sadd.s32 %s26, 1
      %s28 = scalar_select %p25, %s26, %s27
      %p31 = pneg %p25
      %p32 = scmp.eq.s32.totalorder %s16, 3
      %p33 = por %p31, %p32
      %p34 = scmp.ne.s32.totalorder %s26, %s29
      %p35 = scmp.eq.s32.totalorder %s16, 0
      %p36 = por %p34, %p35
      %p37 = scmp.ne.s32.totalorder %s26, %s29
      %p38 = scmp.eq.s32.totalorder %s21, 3
      %p39 = por %p37, %p38
      %p40 = scmp.ne.s32.totalorder %s29, %s30
      %p41 = scmp.eq.s32.totalorder %s21, 0
      %p42 = por %p40, %p41
      %p43 = scmp.ne.s32.totalorder %s29, %s30
      %p44 = scmp.eq.s32.totalorder %s22, 3
      %p45 = por %p43, %p44
      %p47 = scmp.ne.s32.totalorder %s30, %s46
      %p48 = scmp.eq.s32.totalorder %s22, 0
      %p49 = por %p47, %p48
      %s51 = sadd.s32 %s50, 1
      %p54 = scmp.eq.s32.totalorder %s16, 3
      %p55 = scmp.ne.s32.totalorder %s50, %s52
      %p56 = scmp.eq.s32.totalorder %s16, 0
      %p57 = por %p55, %p56
      %p58 = scmp.ne.s32.totalorder %s50, %s52
      %p59 = scmp.eq.s32.totalorder %s21, 3
      %p60 = por %p58, %p59
      %p61 = scmp.ne.s32.totalorder %s52, %s53
      %p62 = scmp.eq.s32.totalorder %s21, 0
      %p63 = por %p61, %p62
      %p64 = scmp.ne.s32.totalorder %s52, %s53
      %p65 = scmp.eq.s32.totalorder %s22, 3
      %p66 = por %p64, %p65
      %p68 = scmp.ne.s32.totalorder %s53, %s67
      %p69 = scmp.eq.s32.totalorder %s22, 0
      %p70 = por %p68, %p69
      %s72 = sadd.s32 %s71, 1
      %p75 = scmp.eq.s32.totalorder %s16, 3
      %p76 = scmp.ne.s32.totalorder %s71, %s73
      %p77 = scmp.eq.s32.totalorder %s16, 0
      %p78 = por %p76, %p77
      %p79 = scmp.ne.s32.totalorder %s71, %s73
      %p80 = scmp.eq.s32.totalorder %s21, 3
      %p81 = por %p79, %p80
      %p82 = scmp.ne.s32.totalorder %s73, %s74
      %p83 = scmp.eq.s32.totalorder %s21, 0
      %p84 = por %p82, %p83
      %p85 = scmp.ne.s32.totalorder %s73, %s74
      %p86 = scmp.eq.s32.totalorder %s22, 3
      %p87 = por %p85, %p86
      %p89 = scmp.ne.s32.totalorder %s74, %s88
      %p90 = scmp.eq.s32.totalorder %s22, 0
      %p91 = por %p89, %p90
      %s93 = sadd.s32 %s92, 1
      %p96 = scmp.eq.s32.totalorder %s16, 3
      %p97 = scmp.ne.s32.totalorder %s92, %s94
      %p98 = scmp.eq.s32.totalorder %s16, 0
      %p99 = por %p97, %p98
      %p100 = scmp.ne.s32.totalorder %s92, %s94
      %p101 = scmp.eq.s32.totalorder %s21, 3
      %p102 = por %p100, %p101
      %p103 = scmp.ne.s32.totalorder %s94, %s95
      %p104 = scmp.eq.s32.totalorder %s21, 0
      %p105 = por %p103, %p104
      %p106 = scmp.ne.s32.totalorder %s94, %s95
      %p107 = scmp.eq.s32.totalorder %s22, 3
      %p108 = por %p106, %p107
      %p110 = scmp.ne.s32.totalorder %s95, %s109
      %p111 = scmp.eq.s32.totalorder %s22, 0
      %p112 = por %p110, %p111
      %s114 = sadd.s32 %s113, 1
      %p117 = scmp.eq.s32.totalorder %s16, 3
      %p118 = scmp.ne.s32.totalorder %s113, %s115
      %p119 = scmp.eq.s32.totalorder %s16, 0
      %p120 = por %p118, %p119
      %p121 = scmp.ne.s32.totalorder %s113, %s115
      %p122 = scmp.eq.s32.totalorder %s21, 3
      %p123 = por %p121, %p122
      %p124 = scmp.ne.s32.totalorder %s115, %s116
      %p125 = scmp.eq.s32.totalorder %s21, 0
      %p126 = por %p124, %p125
      %p127 = scmp.ne.s32.totalorder %s115, %s116
      %p128 = scmp.eq.s32.totalorder %s22, 3
      %p129 = por %p127, %p128
      %p131 = scmp.ne.s32.totalorder %s116, %s130
      %p132 = scmp.eq.s32.totalorder %s22, 0
      %p133 = por %p131, %p132
      %s135 = sadd.s32 %s134, 1
      %p138 = scmp.eq.s32.totalorder %s16, 3
      %p139 = scmp.ne.s32.totalorder %s134, %s136
      %p140 = scmp.eq.s32.totalorder %s16, 0
      %p141 = por %p139, %p140
      %p142 = scmp.ne.s32.totalorder %s134, %s136
      %p143 = scmp.eq.s32.totalorder %s21, 3
      %p144 = por %p142, %p143
      %p145 = scmp.ne.s32.totalorder %s136, %s137
      %p146 = scmp.eq.s32.totalorder %s21, 0
      %p147 = por %p145, %p146
      %p148 = scmp.ne.s32.totalorder %s136, %s137
      %p149 = scmp.eq.s32.totalorder %s22, 3
      %p150 = por %p148, %p149
      %p152 = scmp.ne.s32.totalorder %s137, %s151
      %p153 = scmp.eq.s32.totalorder %s22, 0
      %p154 = por %p152, %p153
      %s156 = sadd.s32 %s155, 1
      %p159 = scmp.eq.s32.totalorder %s16, 3
      %p160 = scmp.ne.s32.totalorder %s155, %s157
      %p161 = scmp.eq.s32.totalorder %s16, 0
      %p162 = por %p160, %p161
      %p163 = scmp.ne.s32.totalorder %s155, %s157
      %p164 = scmp.eq.s32.totalorder %s21, 3
      %p165 = por %p163, %p164
      %p166 = scmp.ne.s32.totalorder %s157, %s158
      %p167 = scmp.eq.s32.totalorder %s21, 0
      %p168 = por %p166, %p167
      %p169 = scmp.ne.s32.totalorder %s157, %s158
      %p170 = scmp.eq.s32.totalorder %s22, 3
      %p171 = por %p169, %p170
      %p173 = scmp.ne.s32.totalorder %s158, %s172
      %p174 = scmp.eq.s32.totalorder %s22, 0
      %p175 = por %p173, %p174
      %s176 = ssub.s32 %s16, %s23
      %p177 = scmp.eq.s32.totalorder %s176, 0
      %s179 = sadd.s32 %s178, 1
      %s180 = scalar_select %p177, %s178, %s179
      %p183 = pneg %p177
      %p184 = scmp.eq.s32.totalorder %s16, 3
      %p185 = por %p183, %p184
      %p186 = scmp.ne.s32.totalorder %s178, %s181
      %p187 = scmp.eq.s32.totalorder %s16, 0
      %p188 = por %p186, %p187
      %p189 = scmp.ne.s32.totalorder %s178, %s181
      %p190 = scmp.eq.s32.totalorder %s21, 3
      %p191 = por %p189, %p190
      %p192 = scmp.ne.s32.totalorder %s181, %s182
      %p193 = scmp.eq.s32.totalorder %s21, 0
      %p194 = por %p192, %p193
      %p195 = scmp.ne.s32.totalorder %s181, %s182
      %p196 = scmp.eq.s32.totalorder %s22, 3
      %p197 = por %p195, %p196
      %p199 = scmp.ne.s32.totalorder %s182, %s198
      %p200 = scmp.eq.s32.totalorder %s22, 0
      %p201 = por %p199, %p200
      %p202 = scmp.le.s32.totalorder 1, %s16
      %p203 = scmp.lt.s32.totalorder %s16, 5
      %p204 = pnand %p202, %p203
      %p205 = pneg %p204
      // Predicated region
      $region9: #{tpu_custom_call.1} parent=5 // pred_check
        _
      $region10: #{tpu_custom_call.1} parent=5 // pred_check_branch
        %207 = sbr.rel (%p204) target = $region12
      $region11: #{tpu_custom_call.1} parent=5 // pred_region
        %s208 = ssub.s32 %s16, 1
        // Predicated region
        $region13: #{tpu_custom_call.1} parent=11 // pred_check
          %p209 = pneg %p63
        $region14: #{tpu_custom_call.1} parent=11 // pred_check_branch
          %211 = sbr.rel (%p209) target = $region16
        $region15: #{tpu_custom_call.1} parent=11 // pred_region
          _
        $region16: #{tpu_custom_call.1} parent=11 // pred_fallthru
          _
        // Predicated region
        $region17: #{tpu_custom_call.1} parent=11 // pred_check
          %p212 = pneg %p84
        $region18: #{tpu_custom_call.1} parent=11 // pred_check_branch
          %214 = sbr.rel (%p212) target = $region20
        $region19: #{tpu_custom_call.1} parent=11 // pred_region
          _
        $region20: #{tpu_custom_call.1} parent=11 // pred_fallthru
          _
        // Predicated region
        $region21: #{tpu_custom_call.1} parent=11 // pred_check
          %p215 = pneg %p105
        $region22: #{tpu_custom_call.1} parent=11 // pred_check_branch
          %217 = sbr.rel (%p215) target = $region24
        $region23: #{tpu_custom_call.1} parent=11 // pred_region
          _
        $region24: #{tpu_custom_call.1} parent=11 // pred_fallthru
          _
        // Predicated region
        $region25: #{tpu_custom_call.1} parent=11 // pred_check
          %p218 = pneg %p126
        $region26: #{tpu_custom_call.1} parent=11 // pred_check_branch
          %220 = sbr.rel (%p218) target = $region28
        $region27: #{tpu_custom_call.1} parent=11 // pred_region
          _
        $region28: #{tpu_custom_call.1} parent=11 // pred_fallthru
          _
        // Predicated region
        $region29: #{tpu_custom_call.1} parent=11 // pred_check
          %p221 = pneg %p147
        $region30: #{tpu_custom_call.1} parent=11 // pred_check_branch
          %223 = sbr.rel (%p221) target = $region32
        $region31: #{tpu_custom_call.1} parent=11 // pred_region
          _
        $region32: #{tpu_custom_call.1} parent=11 // pred_fallthru
          _
        // Predicated region
        $region33: #{tpu_custom_call.1} parent=11 // pred_check
          %p224 = pneg %p168
        $region34: #{tpu_custom_call.1} parent=11 // pred_check_branch
          %226 = sbr.rel (%p224) target = $region36
        $region35: #{tpu_custom_call.1} parent=11 // pred_region
          _
        $region36: #{tpu_custom_call.1} parent=11 // pred_fallthru
          _
      $region12: #{tpu_custom_call.1} parent=5 // pred_fallthru
        _
      %p227 = scmp.lt.s32.totalorder %s16, 4
      // Predicated region
      $region37: #{tpu_custom_call.1} parent=5 // pred_check
        %p228 = pneg %p227
      $region38: #{tpu_custom_call.1} parent=5 // pred_check_branch
        %230 = sbr.rel (%p228) target = $region40
      $region39: #{tpu_custom_call.1} parent=5 // pred_region
        // Predicated region
        $region41: #{tpu_custom_call.1} parent=39 // pred_check
          %p231 = pneg %p36
        $region42: #{tpu_custom_call.1} parent=39 // pred_check_branch
          %233 = sbr.rel (%p231) target = $region44
        $region43: #{tpu_custom_call.1} parent=39 // pred_region
          %s234 = smul.u32 8, %s16
          %p235 = scmp.lt.s32.totalorder %s234, 31
          %s236 = scalar_select %p235, %s234, 31
          %s237 = smul.addr %s236, 8
          %s238 = scalar_lea.vmem %s0, %s237
          %s239 = smul.u32 8, %s16
        $region44: #{tpu_custom_call.1} parent=39 // pred_fallthru
          _
      $region40: #{tpu_custom_call.1} parent=5 // pred_fallthru
        _
      %p240 = scmp.le.s32.totalorder 1, %s16
      %p241 = scmp.lt.s32.totalorder %s16, 5
      %p242 = pnand %p240, %p241
      %p243 = pneg %p242
      // Predicated region
      $region45: #{tpu_custom_call.1} parent=5 // pred_check
        _
      $region46: #{tpu_custom_call.1} parent=5 // pred_check_branch
        %245 = sbr.rel (%p242) target = $region48
      $region47: #{tpu_custom_call.1} parent=5 // pred_region
        %s246 = ssub.s32 %s16, 1
        %s247 = smul.u32 8, %s21
        %p248 = scmp.lt.s32.totalorder %s247, 31
        %s249 = scalar_select %p248, %s247, 31
        %s250 = smul.addr %s249, 8
        %s251 = scalar_lea.vmem %s0, %s250
        %p252 = pneg %p42
        %p253 = pneg %p39
        %p254 = pneg %p63
        %p255 = pneg %p60
        %p256 = pneg %p84
        %p257 = pneg %p81
        %p258 = pneg %p105
        %p259 = pneg %p102
        %p260 = pneg %p126
        %p261 = pneg %p123
        %p262 = pneg %p147
        %p263 = pneg %p144
        %p264 = pneg %p168
        %p265 = pneg %p165
        %p266 = pneg %p194
        %p267 = pneg %p191
        %s268 = sand.u32 %s181, 1
        %s269 = scalar_lea.sflag [#allocation3], %s268
        %s270 = sand.u32 %s181, 1
        %s271 = smul.addr %s270, 64
        %s272 = scalar_lea.vmem [#allocation2], %s271
        %s273 = smul.u32 8, %s21
        %p274 = scmp.lt.s32.totalorder %s273, 31
        %s275 = scalar_select %p274, %s273, 31
        %s276 = smul.addr %s275, 8
        %s277 = scalar_lea.vmem %s0, %s276
        %s278 = smul.u32 8, %s21
        %s279 = smul.u32 8, %s21
        %v281 = vld [vmem:[%s277] sm:$0xff]
        %v282 = vld [vmem:[%s277 + $0x8] sm:$0xff]
        %v283 = vld [vmem:[%s277 + $0x10] sm:$0xff]
        %v284 = vld [vmem:[%s277 + $0x18] sm:$0xff]
        %v285 = vld [vmem:[%s277 + $0x20] sm:$0xff]
        %v286 = vld [vmem:[%s277 + $0x28] sm:$0xff]
        %v287 = vld [vmem:[%s277 + $0x30] sm:$0xff]
        %v288 = vld [vmem:[%s277 + $0x38] sm:$0xff]
        %v289 = vpack.c.bf16 %v282, %v281
        %v290 = vpack.c.bf16 %v284, %v283
        %v291 = vpack.c.bf16 %v286, %v285
        %v292 = vpack.c.bf16 %v288, %v287
        %v293 = vld [vmem:[%s1] sm:$0xf]
        %v294 = vld [vmem:[%s1 + $0x4] sm:$0xf]
        %v295 = vld [vmem:[%s1 + $0x8] sm:$0xf]
        %v296 = vld [vmem:[%s1 + $0xc] sm:$0xf]
        %v297 = vld [vmem:[%s2] sm:$0x1]
        %v299 = vperm.slane %v297, 0
        %v305 = vunpack.c.l.b16 %v293
        %v306 = vunpack.c.l.b16 %v294
        %v307 = vunpack.c.l.b16 %v295
        %v308 = vunpack.c.l.b16 %v296
        %v309 = vpack.c.b16 %v306, %v305
        %v310 = vpack.c.b16 %v308, %v307
        %vm313 = vcmask 261120
        %v315 = vsel %vm313, %v289, 0
        %v318 = vsel %vm313, %v290, 0
        %v321 = vsel %vm313, %v291, 0
        %v324 = vsel %vm313, %v292, 0
        %326 = vmatpush.bf16.msra.mxu0 0
        %327 = vmatpush.bf16.msra.mxu0 0
        %328 = vmatpush.bf16.msra.mxu0 0
        %329 = vmatpush.bf16.msra.mxu0 0
        %330 = vmatpush.bf16.msra.mxu0 0
        %331 = vmatpush.bf16.msra.mxu0 0
        %332 = vmatpush.bf16.msra.mxu0 %v310
        %333 = vmatpush.bf16.msra.mxu0 %v309
        %334 = vmatmul.bf16.gmra.mxu0 %v315
        %v335 = vpop.f32.mrf.mxu0
        %v336 = vadd.f32 %v299, %v335
        %v337 = vpop.f32.mrf.mxu0
        %v338 = vadd.f32 %v299, %v337
        %339 = vmatmul.bf16.gmra.mxu0 %v318
        %v340 = vpop.f32.mrf.mxu0
        %v341 = vadd.f32 %v299, %v340
        %v342 = vpop.f32.mrf.mxu0
        %v343 = vadd.f32 %v299, %v342
        %344 = vmatmul.bf16.gmra.mxu0 %v321
        %v345 = vpop.f32.mrf.mxu0
        %v346 = vadd.f32 %v299, %v345
        %v347 = vpop.f32.mrf.mxu0
        %v348 = vadd.f32 %v299, %v347
        %349 = vmatmul.bf16.gmra.mxu0 %v324
        %v350 = vpop.f32.mrf.mxu0
        %v351 = vadd.f32 %v299, %v350
        %v352 = vpop.f32.mrf.mxu0
        %v353 = vadd.f32 %v299, %v352
        %354 = vdwg.mxu0
        %v355 = vmax.f32 %v336, 0.0
        %v356 = vmax.f32 %v338, 0.0
        %v357 = vmax.f32 %v341, 0.0
        %v358 = vmax.f32 %v343, 0.0
        %v359 = vmax.f32 %v346, 0.0
        %v360 = vmax.f32 %v348, 0.0
        %v361 = vmax.f32 %v351, 0.0
        %v362 = vmax.f32 %v353, 0.0
        %v363 = vpack.c.bf16 %v356, %v355
        %v364 = vpack.c.bf16 %v358, %v357
        %v365 = vpack.c.bf16 %v360, %v359
        %v366 = vpack.c.bf16 %v362, %v361
        %v367 = vld [vmem:[%s3] sm:$0xf]
        %v368 = vld [vmem:[%s3 + $0x4] sm:$0xf]
        %v369 = vld [vmem:[%s3 + $0x8] sm:$0xf]
        %v370 = vld [vmem:[%s3 + $0xc] sm:$0xf]
        %v371 = vld [vmem:[%s3 + $0x10] sm:$0xf]
        %v372 = vld [vmem:[%s3 + $0x14] sm:$0xf]
        %v373 = vld [vmem:[%s3 + $0x18] sm:$0xf]
        %v374 = vld [vmem:[%s3 + $0x1c] sm:$0xf]
        %v375 = vld [vmem:[%s3 + $0x20] sm:$0xf]
        %v376 = vld [vmem:[%s3 + $0x24] sm:$0xf]
        %v377 = vld [vmem:[%s3 + $0x28] sm:$0xf]
        %v378 = vld [vmem:[%s3 + $0x2c] sm:$0xf]
        %v379 = vld [vmem:[%s3 + $0x30] sm:$0xf]
        %v380 = vld [vmem:[%s3 + $0x34] sm:$0xf]
        %v381 = vld [vmem:[%s3 + $0x38] sm:$0xf]
        %v382 = vld [vmem:[%s3 + $0x3c] sm:$0xf]
        %v383 = vld [vmem:[%s4] sm:$0x1]
        %v385 = vperm.slane %v383, 0
        %v403 = vunpack.c.l.b16 %v367
        %v404 = vunpack.c.l.b16 %v368
        %v405 = vunpack.c.l.b16 %v369
        %v406 = vunpack.c.l.b16 %v370
        %v407 = vunpack.c.l.b16 %v371
        %v408 = vunpack.c.l.b16 %v372
        %v409 = vunpack.c.l.b16 %v373
        %v410 = vunpack.c.l.b16 %v374
        %v411 = vunpack.c.l.b16 %v375
        %v412 = vunpack.c.l.b16 %v376
        %v413 = vunpack.c.l.b16 %v377
        %v414 = vunpack.c.l.b16 %v378
        %v415 = vunpack.c.l.b16 %v379
        %v416 = vunpack.c.l.b16 %v380
        %v417 = vunpack.c.l.b16 %v381
        %v418 = vunpack.c.l.b16 %v382
        %v419 = vpack.c.b16 %v404, %v403
        %v420 = vpack.c.b16 %v406, %v405
        %v421 = vpack.c.b16 %v408, %v407
        %v422 = vpack.c.b16 %v410, %v409
        %v423 = vpack.c.b16 %v412, %v411
        %v424 = vpack.c.b16 %v414, %v413
        %v425 = vpack.c.b16 %v416, %v415
        %v426 = vpack.c.b16 %v418, %v417
        %435 = vmatpush.bf16.msra.mxu0 %v426
        %436 = vmatpush.bf16.msra.mxu0 %v425
        %437 = vmatpush.bf16.msra.mxu0 %v424
        %438 = vmatpush.bf16.msra.mxu0 %v423
        %439 = vmatpush.bf16.msra.mxu0 %v422
        %440 = vmatpush.bf16.msra.mxu0 %v421
        %441 = vmatpush.bf16.msra.mxu0 %v420
        %442 = vmatpush.bf16.msra.mxu0 %v419
        %443 = vmatmul.bf16.gmra.mxu0 %v363
        %v444 = vpop.f32.mrf.mxu0
        %v445 = vadd.f32 %v385, %v444
        %v446 = vpop.f32.mrf.mxu0
        %v447 = vadd.f32 %v385, %v446
        %448 = vmatmul.bf16.gmra.mxu0 %v364
        %v449 = vpop.f32.mrf.mxu0
        %v450 = vadd.f32 %v385, %v449
        %v451 = vpop.f32.mrf.mxu0
        %v452 = vadd.f32 %v385, %v451
        %453 = vmatmul.bf16.gmra.mxu0 %v365
        %v454 = vpop.f32.mrf.mxu0
        %v455 = vadd.f32 %v385, %v454
        %v456 = vpop.f32.mrf.mxu0
        %v457 = vadd.f32 %v385, %v456
        %458 = vmatmul.bf16.gmra.mxu0 %v366
        %v459 = vpop.f32.mrf.mxu0
        %v460 = vadd.f32 %v385, %v459
        %v461 = vpop.f32.mrf.mxu0
        %v462 = vadd.f32 %v385, %v461
        %463 = vdwg.mxu0
        %v464 = vmax.f32 %v445, 0.0
        %v465 = vmax.f32 %v447, 0.0
        %v466 = vmax.f32 %v450, 0.0
        %v467 = vmax.f32 %v452, 0.0
        %v468 = vmax.f32 %v455, 0.0
        %v469 = vmax.f32 %v457, 0.0
        %v470 = vmax.f32 %v460, 0.0
        %v471 = vmax.f32 %v462, 0.0
        %v472 = vpack.c.bf16 %v465, %v464
        %v473 = vpack.c.bf16 %v467, %v466
        %v474 = vpack.c.bf16 %v469, %v468
        %v475 = vpack.c.bf16 %v471, %v470
        %v476 = vld [vmem:[%s5] sm:$0xf]
        %v477 = vld [vmem:[%s5 + $0x4] sm:$0xf]
        %v478 = vld [vmem:[%s5 + $0x8] sm:$0xf]
        %v479 = vld [vmem:[%s5 + $0xc] sm:$0xf]
        %v480 = vld [vmem:[%s5 + $0x10] sm:$0xf]
        %v481 = vld [vmem:[%s5 + $0x14] sm:$0xf]
        %v482 = vld [vmem:[%s5 + $0x18] sm:$0xf]
        %v483 = vld [vmem:[%s5 + $0x1c] sm:$0xf]
        %v484 = vld [vmem:[%s5 + $0x20] sm:$0xf]
        %v485 = vld [vmem:[%s5 + $0x24] sm:$0xf]
        %v486 = vld [vmem:[%s5 + $0x28] sm:$0xf]
        %v487 = vld [vmem:[%s5 + $0x2c] sm:$0xf]
        %v488 = vld [vmem:[%s5 + $0x30] sm:$0xf]
        %v489 = vld [vmem:[%s5 + $0x34] sm:$0xf]
        %v490 = vld [vmem:[%s5 + $0x38] sm:$0xf]
        %v491 = vld [vmem:[%s5 + $0x3c] sm:$0xf]
        %v492 = vld [vmem:[%s6] sm:$0x1]
        %v494 = vperm.slane %v492, 0
        %v512 = vunpack.c.l.b16 %v476
        %v513 = vunpack.c.l.b16 %v477
        %v514 = vunpack.c.l.b16 %v478
        %v515 = vunpack.c.l.b16 %v479
        %v516 = vunpack.c.l.b16 %v480
        %v517 = vunpack.c.l.b16 %v481
        %v518 = vunpack.c.l.b16 %v482
        %v519 = vunpack.c.l.b16 %v483
        %v520 = vunpack.c.l.b16 %v484
        %v521 = vunpack.c.l.b16 %v485
        %v522 = vunpack.c.l.b16 %v486
        %v523 = vunpack.c.l.b16 %v487
        %v524 = vunpack.c.l.b16 %v488
        %v525 = vunpack.c.l.b16 %v489
        %v526 = vunpack.c.l.b16 %v490
        %v527 = vunpack.c.l.b16 %v491
        %v528 = vpack.c.b16 %v513, %v512
        %v529 = vpack.c.b16 %v515, %v514
        %v530 = vpack.c.b16 %v517, %v516
        %v531 = vpack.c.b16 %v519, %v518
        %v532 = vpack.c.b16 %v521, %v520
        %v533 = vpack.c.b16 %v523, %v522
        %v534 = vpack.c.b16 %v525, %v524
        %v535 = vpack.c.b16 %v527, %v526
        %544 = vmatpush.bf16.msra.mxu0 %v535
        %545 = vmatpush.bf16.msra.mxu0 %v534
        %546 = vmatpush.bf16.msra.mxu0 %v533
        %547 = vmatpush.bf16.msra.mxu0 %v532
        %548 = vmatpush.bf16.msra.mxu0 %v531
        %549 = vmatpush.bf16.msra.mxu0 %v530
        %550 = vmatpush.bf16.msra.mxu0 %v529
        %551 = vmatpush.bf16.msra.mxu0 %v528
        %552 = vmatmul.bf16.gmra.mxu0 %v472
        %v553 = vpop.f32.mrf.mxu0
        %v554 = vadd.f32 %v494, %v553
        %v555 = vpop.f32.mrf.mxu0
        %v556 = vadd.f32 %v494, %v555
        %557 = vmatmul.bf16.gmra.mxu0 %v473
        %v558 = vpop.f32.mrf.mxu0
        %v559 = vadd.f32 %v494, %v558
        %v560 = vpop.f32.mrf.mxu0
        %v561 = vadd.f32 %v494, %v560
        %562 = vmatmul.bf16.gmra.mxu0 %v474
        %v563 = vpop.f32.mrf.mxu0
        %v564 = vadd.f32 %v494, %v563
        %v565 = vpop.f32.mrf.mxu0
        %v566 = vadd.f32 %v494, %v565
        %567 = vmatmul.bf16.gmra.mxu0 %v475
        %v568 = vpop.f32.mrf.mxu0
        %v569 = vadd.f32 %v494, %v568
        %v570 = vpop.f32.mrf.mxu0
        %v571 = vadd.f32 %v494, %v570
        %572 = vdwg.mxu0
        %573 = vst [vmem:[%s272] sm:$0xff] %v554
        %574 = vst [vmem:[%s272 + $0x8] sm:$0xff] %v556
        %575 = vst [vmem:[%s272 + $0x10] sm:$0xff] %v559
        %576 = vst [vmem:[%s272 + $0x18] sm:$0xff] %v561
        %577 = vst [vmem:[%s272 + $0x20] sm:$0xff] %v564
        %578 = vst [vmem:[%s272 + $0x28] sm:$0xff] %v566
        %579 = vst [vmem:[%s272 + $0x30] sm:$0xff] %v569
        %580 = vst [vmem:[%s272 + $0x38] sm:$0xff] %v571
        %s581 = sand.u32 %s181, 1
        %s582 = scalar_lea.sflag [#allocation3], %s581
        %s583 = sand.u32 %s181, 1
        %s584 = smul.addr %s583, 64
        %s585 = scalar_lea.vmem [#allocation2], %s584
        // Predicated region
        $region49: #{tpu_custom_call.1} parent=47 // pred_check
          %p586 = pneg %p191
        $region50: #{tpu_custom_call.1} parent=47 // pred_check_branch
          %588 = sbr.rel (%p586) target = $region52
        $region51: #{tpu_custom_call.1} parent=47 // pred_region
          %s589 = smul.u32 8, %s21
          %591 = vsyncadd %s582, 0
          %s592 = smul.addr %s589, 8
          %s593 = scalar_lea.hbm %s7, %s592
          %s594 = sshll.u32 %s585, 4
          %s595 = int_to_ptr.vmem [resolvable:$true] %s594
          %s596 = sshll.u32 %s593, 4
          %s597 = int_to_ptr.hbm [resolvable:$true] %s596
          %602 = dma.vmem_to_hbm [thread:$0]  %s595, 1024, %s597, %s582, 128, 128, 8
        $region52: #{tpu_custom_call.1} parent=47 // pred_fallthru
          _
      $region48: #{tpu_custom_call.1} parent=5 // pred_fallthru
        _
      %p603 = scmp.le.s32.totalorder 2, %s16
      // Predicated region
      $region53: #{tpu_custom_call.1} parent=5 // pred_check
        %p604 = pneg %p603
      $region54: #{tpu_custom_call.1} parent=5 // pred_check_branch
        %606 = sbr.rel (%p604) target = $region56
      $region55: #{tpu_custom_call.1} parent=5 // pred_region
        %s607 = ssub.s32 %s16, 2
        // Predicated region
        $region57: #{tpu_custom_call.1} parent=55 // pred_check
          %p608 = pneg %p197
        $region58: #{tpu_custom_call.1} parent=55 // pred_check_branch
          %610 = sbr.rel (%p608) target = $region60
        $region59: #{tpu_custom_call.1} parent=55 // pred_region
          %s611 = sand.u32 %s182, 1
          %s612 = scalar_lea.sflag [#allocation3], %s611
          %s613 = sand.u32 %s182, 1
          %s614 = smul.addr %s613, 64
          %s615 = scalar_lea.vmem [#allocation2], %s614
          %617 = dma.done %s612, 1024
        $region60: #{tpu_custom_call.1} parent=55 // pred_fallthru
          _
      $region56: #{tpu_custom_call.1} parent=5 // pred_fallthru
        _
    $region6: #{tpu_custom_call.1} parent=1 // loop_footer
      %s20 = sadd.s32 1, %s16
    $region7: #{tpu_custom_call.1} parent=1 // loop_footer_branch
      %15 = sbr.rel target = $region3
    $region8: #{tpu_custom_call.1} parent=1 // loop_exit
      _
    %618 = vsyncpa [#allocation3], 1
    %s619 = scalar_lea.sflag [#allocation3], 1
    %620 = vsyncpa %s619, 1

</llo_original>
